<compile_context>
chip_gen: v6e
topology: v6e:2x2x1
jax: 0.10.0
libtpu: 0.0.40
codegen_flags: <defaults>
</compile_context>

<pallas_src>
import copy
import functools

import numpy as np
import jax
import jax.numpy as jnp
from jax.experimental import pallas as pl
from jax.experimental.pallas import tpu as pltpu

# ----------------------------- board glue (mirrors __init__) ----------------

def starting_piece_map():
    """Standard chess starting position as {square: piece_char}."""
    m = {}
    back = ['R', 'N', 'B', 'Q', 'K', 'B', 'N', 'R']
    for i, p in enumerate(back):
        m[i] = p                 # white back rank, squares 0..7
        m[56 + i] = p.lower()    # black back rank, squares 56..63
    for i in range(8):
        m[8 + i] = 'P'           # white pawns
        m[48 + i] = 'p'          # black pawns
    return m


def remove_kings_from_piece_map(piece_map):
    _piece_map = copy.copy(piece_map)
    _kings_map = {}
    for key, value in piece_map.items():
        if str(value) in ['k', 'K']:
            del _piece_map[key]
            _kings_map[key] = value
    return _piece_map, _kings_map


def reduce_piece_map(pmap, list_pieces=('p', 'b', 'n', 'r', 'q'), color=None):
    _map = copy.copy(pmap)
    _chosen_map = {}
    for key, value in pmap.items():
        if str(value).lower() in list_pieces:
            if color is None:
                del _map[key]
                _chosen_map[key] = value
            elif color == 'white' and str(value).isupper():
                del _map[key]
                _chosen_map[key] = value
            elif color == 'black' and str(value).islower():
                del _map[key]
                _chosen_map[key] = value
    return _chosen_map, _map


# piece-square feature planes: 12 piece types x 64 squares = 768 features
PLANE = {'P': 0, 'N': 1, 'B': 2, 'R': 3, 'Q': 4, 'K': 5,
         'p': 6, 'n': 7, 'b': 8, 'r': 9, 'q': 10, 'k': 11}
N_FEAT = 12 * 64   # 768
HIDDEN = 256       # NNUE-style accumulator width (one MXU K pass)
N_PAD = 128        # chosen-piece ("x") lane dim padded to one full vreg lane axis
MAX_TILE_M = 1024  # batch-tile cap (multiple of 128)


def piece_features(piece_map):
    f = np.zeros((N_FEAT,), np.float32)
    for sq, pc in piece_map.items():
        f[PLANE[pc] * 64 + sq] = 1.0
    return f


def _round_up(x, m):
    return ((x + m - 1) // m) * m


def _choose_tile_m(b128):
    """Pick a batch tile: multiple of 128, divides the padded batch, <= MAX_TILE_M,
    and prefer >= 2 grid steps so v7x's two TensorCores both get work."""
    divisors = [t for t in range(128, min(b128, MAX_TILE_M) + 1, 128)
                if b128 % t == 0]
    tile = max(divisors)
    two_step = [t for t in divisors if b128 // t >= 2]
    if two_step:
        tile = max(two_step)
    return tile


# ----------------------------- Pallas kernel --------------------------------

def nnue_eval_kernel(x_ref, w1c_ref, acc0_ref, w2r_ref, out_ref, *, b2_val):
    # x     (TILE_M, N_PAD)   int8  binary selection of chosen pieces (0-padded)
    # w1c   (N_PAD, HIDDEN)   bf16  folded (chosen one-hot @ w1) weight slice
    # acc0  (1, HIDDEN)       f32   folded (static_feat @ w1 + b1) accumulator
    # w2r   (1, HIDDEN)       bf16  output-layer eval column, stored as a row
    # out   (1, 1, TILE_M)    f32   per-row evaluation (lane-dense row)
    # int8 -> f32 -> bf16 on the VPU (v7x MXU has no integer path; cast is cheap).
    x = x_ref[...].astype(jnp.float32).astype(jnp.bfloat16)
    acc = jnp.dot(x, w1c_ref[...],
                  preferred_element_type=jnp.float32) + acc0_ref[...]
    h = jnp.clip(acc, 0.0, 1.0).astype(jnp.bfloat16)          # clipped-ReLU
    # Contract the hidden dim of (1,H) x (TILE_M,H) -> (1,TILE_M): the eval lands
    # directly on the lane axis (unmasked, lane-dense store; no XLU transpose).
    ev = jnp.einsum('oh,mh->om', w2r_ref[...], h,
                    preferred_element_type=jnp.float32) + b2_val
    out_ref[...] = ev[None]                                    # (1, 1, TILE_M)


def nnue_eval_pallas(x_i8, w1c, acc0, w2_row, b2_val, tile_m):
    """x_i8: (B_pad, N_PAD) int8 with B_pad % tile_m == 0.

    Returns (B_pad,) f32 evaluations (one per batch row)."""
    b_pad = x_i8.shape[0]
    num_tiles = b_pad // tile_m
    grid = (num_tiles,)
    weight_bytes = w1c.size * 2 + acc0.size * 4 + w2_row.size * 2
    cost = pl.CostEstimate(
        flops=2 * b_pad * (N_PAD * HIDDEN + HIDDEN),
        transcendentals=0,
        bytes_accessed=weight_bytes + x_i8.size + b_pad * 4,
    )
    out = pl.pallas_call(
        functools.partial(nnue_eval_kernel, b2_val=b2_val),
        out_shape=jax.ShapeDtypeStruct((num_tiles, 1, tile_m), jnp.float32),
        grid_spec=pltpu.PrefetchScalarGridSpec(
            num_scalar_prefetch=0,
            grid=grid,
            in_specs=[
                pl.BlockSpec((tile_m, N_PAD), lambda i: (i, 0)),   # x tile (int8)
                pl.BlockSpec((N_PAD, HIDDEN), lambda i: (0, 0)),   # VMEM-resident weights
                pl.BlockSpec((1, HIDDEN), lambda i: (0, 0)),
                pl.BlockSpec((1, HIDDEN), lambda i: (0, 0)),
            ],
            out_specs=pl.BlockSpec((1, 1, tile_m), lambda i: (i, 0, 0)),
        ),
        compiler_params=pltpu.CompilerParams(
            dimension_semantics=("parallel",)),
        cost_estimate=cost,
    )(x_i8, w1c, acc0, w2_row)
    return out.reshape(b_pad)


# ----------------------------- module equivalent ----------------------------

class EvalClassPallas:
    """JAX/Pallas equivalent of eval_class (synthetic NNUE evaluation)."""

    def __init__(self, piece_map, pertub_pieces=('p', 'b', 'n', 'r', 'q'),
                 color=None):
        self.org_piece_map = piece_map
        self.map, self.king_map = remove_kings_from_piece_map(self.org_piece_map)
        self.chosen_map, self.static_map = reduce_piece_map(
            self.map, list_pieces=pertub_pieces, color=color)
        self.chosen_map_keys = list(self.chosen_map.keys())
        self.n_chosen = len(self.chosen_map_keys)
        self.input = jnp.ones((1, self.n_chosen), jnp.float32)

        # one one-hot feature row per chosen piece
        chosen_rows = np.zeros((self.n_chosen, N_FEAT), np.float32)
        for i, sq in enumerate(self.chosen_map_keys):
            chosen_rows[i, PLANE[self.map[sq]] * 64 + sq] = 1.0
        static_pieces = {**self.static_map, **self.king_map}
        static_feat = piece_features(static_pieces)[None, :]        # (1, F)

        # deterministic synthetic NNUE weights
        k1, k2, k3, k4 = jax.random.split(jax.random.PRNGKey(0), 4)
        w1 = np.asarray(jax.random.normal(k1, (N_FEAT, HIDDEN), jnp.float32)) * 0.05
        b1 = np.asarray(jax.random.normal(k2, (1, HIDDEN), jnp.float32)) * 0.05
        w2 = np.asarray(jax.random.normal(k3, (HIDDEN, 1), jnp.float32)) * 0.05
        b2 = float(np.asarray(jax.random.normal(k4, (), jnp.float32)) * 0.05)

        # ---- host-side folding --------------------------------------------
        # x @ chosen_rows @ w1  ==  x @ (chosen_rows @ w1); static pieces, kings
        # and the hidden bias fold into one resident (1, HIDDEN) accumulator.
        w1_chosen = chosen_rows @ w1                                 # (n, HIDDEN)
        w1c_pad = np.zeros((N_PAD, HIDDEN), np.float32)              # lane-pad x dim
        w1c_pad[:self.n_chosen, :] = w1_chosen
        acc_static = static_feat @ w1 + b1                           # (1, HIDDEN)

        self.w1c = jnp.asarray(w1c_pad, jnp.bfloat16)                # bf16 weights
        self.acc0 = jnp.asarray(acc_static, jnp.float32)             # f32 accumulator
        self.w2_row = jnp.asarray(w2.T, jnp.bfloat16)                # (1, HIDDEN)
        self.b2_val = b2                                             # folded scalar bias

    def forward(self, x):
        """x: (n,) or (B, n) binary selection over non-king chosen pieces.

        Returns (1, 1) for a single vector (matching the torch module) or
        (B, 1) for an explicit batch of perturbation vectors.
        """
        x = jnp.asarray(x)
        if x.ndim == 1:
            x = x[None, :]
        b, n = x.shape
        b_pad = _round_up(b, 128)
        tile_m = _choose_tile_m(b_pad)
        # single pad (no zeros+scatter extra HBM pass); int8 halves input traffic
        x_i8 = jnp.pad(x.astype(jnp.int8), ((0, b_pad - b), (0, N_PAD - n)))
        ev = nnue_eval_pallas(x_i8, self.w1c, self.acc0, self.w2_row,
                              self.b2_val, tile_m)
        return ev[:b, None]   # (B, 1) f32; (1, 1) for the single-vector case

    def reference(self, x):
        """Pure-JAX reference of the same fused MLP (for correctness checks)."""
        x = jnp.asarray(x, jnp.float32)
        if x.ndim == 1:
            x = x[None, :]
        w1c = self.w1c[:x.shape[1]].astype(jnp.float32)
        acc = x @ w1c + self.acc0
        h = jnp.clip(acc, 0.0, 1.0).astype(jnp.bfloat16).astype(jnp.float32)
        ev = h @ self.w2_row[0].astype(jnp.float32) + self.b2_val
        return ev[:, None]


# ----------------------------- main ------------------------------------------

if __name__ == "__main__":
    board_map = starting_piece_map()
    model = EvalClassPallas(board_map, pertub_pieces=('p', 'b', 'n', 'r', 'q'),
                            color=None)

    n_chosen = model.n_chosen                       # 30 for the start position
    key = jax.random.PRNGKey(0)

    # batch of perturbation vectors (the workload this module is used for)
    B = 64
    xb = (jax.random.uniform(key, (B, n_chosen)) > 0.5).astype(jnp.float32)
    yb = jax.block_until_ready(model.forward(xb))
    assert yb.shape == (B, 1), yb.shape
    assert yb.dtype == jnp.float32, yb.dtype
    assert bool(jnp.all(jnp.isfinite(yb)))
    assert bool(jnp.allclose(yb, model.reference(xb), atol=1e-2, rtol=1e-2))

    # single-vector path, matching the original torch module's (1, 1) output
    y1 = jax.block_until_ready(model.forward(xb[0]))
    assert y1.shape == (1, 1), y1.shape
    assert bool(jnp.allclose(y1, yb[0:1], atol=1e-4))

    # larger batch exercising a multi-step ("parallel") grid + padding path
    B2 = 320
    xb2 = (jax.random.uniform(jax.random.PRNGKey(1), (B2, n_chosen)) > 0.5
           ).astype(jnp.float32)
    yb2 = jax.block_until_ready(model.forward(xb2))
    assert yb2.shape == (B2, 1), yb2.shape
    assert bool(jnp.allclose(yb2, model.reference(xb2), atol=1e-2, rtol=1e-2))

    print("KERNEL_OK")
</pallas_src>

<mosaic_0001>
module attributes {stable_mosaic.version = 11 : i64} {
  func.func @nnue_eval_kernel(%arg0: i32, %arg1: memref<128x128xi8, #tpu.memory_space<vmem>>, %arg2: memref<128x256xbf16, #tpu.memory_space<vmem>>, %arg3: memref<1x256xf32, #tpu.memory_space<vmem>>, %arg4: memref<1x256xbf16, #tpu.memory_space<vmem>>, %arg5: memref<1x1x128xf32, #tpu.memory_space<vmem>>) attributes {dimension_semantics = [#tpu.dimension_semantics<parallel>], iteration_bounds = array<i64: 1>, scalar_prefetch = 0 : i64, scratch_operands = 0 : i64, tpu.core_type = #tpu.core_type<tc>, window_params = [{transform_indices = @transform_0, window_bounds = array<i64: 128, 128>}, {pipeline_mode = #tpu.pipeline_mode<synchronous>, transform_indices = @transform_1, window_bounds = array<i64: 128, 256>}, {pipeline_mode = #tpu.pipeline_mode<synchronous>, transform_indices = @transform_2, window_bounds = array<i64: 1, 256>}, {pipeline_mode = #tpu.pipeline_mode<synchronous>, transform_indices = @transform_3, window_bounds = array<i64: 1, 256>}, {transform_indices = @transform_4, window_bounds = array<i64: 1, 1, 128>}]} {
    %c0 = arith.constant 0 : index
    %c0_0 = arith.constant 0 : index
    %0 = vector.load %arg1[%c0, %c0_0] : memref<128x128xi8, #tpu.memory_space<vmem>>, vector<128x128xi8>
    %1 = arith.sitofp %0 : vector<128x128xi8> to vector<128x128xf32>
    %2 = arith.truncf %1 : vector<128x128xf32> to vector<128x128xbf16>
    %c0_1 = arith.constant 0 : index
    %c0_2 = arith.constant 0 : index
    %3 = vector.load %arg2[%c0_1, %c0_2] : memref<128x256xbf16, #tpu.memory_space<vmem>>, vector<128x256xbf16>
    %cst = arith.constant dense<0.000000e+00> : vector<128x256xf32>
    %4 = tpu.matmul %2, %3, %cst {dimension_numbers = #tpu.dot_dimension_numbers<[1], [0], [0], [1], [0, 0, 1, 1], [], []>} : vector<128x128xbf16>, vector<128x256xbf16>, vector<128x256xf32> -> vector<128x256xf32>
    %c0_3 = arith.constant 0 : index
    %c0_4 = arith.constant 0 : index
    %5 = vector.load %arg3[%c0_3, %c0_4] : memref<1x256xf32, #tpu.memory_space<vmem>>, vector<1x256xf32>
    %6 = vector.broadcast %5 : vector<1x256xf32> to vector<128x256xf32>
    %7 = arith.addf %4, %6 : vector<128x256xf32>
    %cst_5 = arith.constant 0.000000e+00 : f32
    %cst_6 = arith.constant 1.000000e+00 : f32
    %8 = vector.broadcast %cst_5 : f32 to vector<128x256xf32>
    %9 = arith.maximumf %8, %7 : vector<128x256xf32>
    %10 = vector.broadcast %cst_6 : f32 to vector<128x256xf32>
    %11 = arith.minimumf %10, %9 : vector<128x256xf32>
    %12 = arith.truncf %11 : vector<128x256xf32> to vector<128x256xbf16>
    %c0_7 = arith.constant 0 : index
    %c0_8 = arith.constant 0 : index
    %13 = vector.load %arg4[%c0_7, %c0_8] : memref<1x256xbf16, #tpu.memory_space<vmem>>, vector<1x256xbf16>
    "tpu.trace_start"() <{level = 10 : i32, message = "oh,mh->om"}> : () -> ()
    %cst_9 = arith.constant dense<0.000000e+00> : vector<1x128xf32>
    %14 = tpu.matmul %13, %12, %cst_9 {dimension_numbers = #tpu.dot_dimension_numbers<[1], [1], [0], [0], [0, 0, 1, 0], [], []>} : vector<1x256xbf16>, vector<128x256xbf16>, vector<1x128xf32> -> vector<1x128xf32>
    "tpu.trace_stop"() : () -> ()
    %cst_10 = arith.constant -0.0310971793 : f32
    %15 = vector.broadcast %cst_10 : f32 to vector<1x128xf32>
    %16 = arith.addf %14, %15 : vector<1x128xf32>
    %17 = vector.shape_cast %16 : vector<1x128xf32> to vector<1x1x128xf32>
    %c0_11 = arith.constant 0 : index
    %c0_12 = arith.constant 0 : index
    %c0_13 = arith.constant 0 : index
    %18 = vector.load %arg5[%c0_11, %c0_12, %c0_13] : memref<1x1x128xf32, #tpu.memory_space<vmem>>, vector<1x1x128xf32>
    tpu.vector_store %arg5[%c0_11, %c0_12, %c0_13], %17 {strides = array<i32>} : memref<1x1x128xf32, #tpu.memory_space<vmem>>, vector<1x1x128xf32>,
    return
  }
  func.func @transform_0(%arg0: i32) -> (i32, i32) {
    %c0_i32 = arith.constant 0 : i32
    %c0_i32_0 = arith.constant 0 : i32
    return %arg0, %c0_i32 : i32, i32
  }
  func.func @transform_1(%arg0: i32) -> (i32, i32) {
    %c0_i32 = arith.constant 0 : i32
    %c0_i32_0 = arith.constant 0 : i32
    %c0_i32_1 = arith.constant 0 : i32
    return %c0_i32, %c0_i32_0 : i32, i32
  }
  func.func @transform_2(%arg0: i32) -> (i32, i32) {
    %c0_i32 = arith.constant 0 : i32
    %c0_i32_0 = arith.constant 0 : i32
    %c0_i32_1 = arith.constant 0 : i32
    return %c0_i32, %c0_i32_0 : i32, i32
  }
  func.func @transform_3(%arg0: i32) -> (i32, i32) {
    %c0_i32 = arith.constant 0 : i32
    %c0_i32_0 = arith.constant 0 : i32
    %c0_i32_1 = arith.constant 0 : i32
    return %c0_i32, %c0_i32_0 : i32, i32
  }
  func.func @transform_4(%arg0: i32) -> (i32, i32, i32) {
    %c0_i32 = arith.constant 0 : i32
    %c0_i32_0 = arith.constant 0 : i32
    %c0_i32_1 = arith.constant 0 : i32
    return %arg0, %c0_i32, %c0_i32_0 : i32, i32, i32
  }
}

</mosaic_0001>

<llo_original>
// kernel: tpu_custom_call.1
$region0: #{tpu_custom_call.1}
  #allocation0 [shape = 'u32[]', space=smem, size = 0x4, offset = 0x4, fixed_abs, tag = 'smem constant byte address 0x4 - core index']
  #allocation1 [shape = 'u32[144,128]{1,0:T(1,128)}', space=vmem, size = 0x12000, scoped, tag = 'internal scratch']
  %s0 = inlined_call_operand.hbm [shape: s8[128,128], index: 0, kind: input, shape index: {}]
  %s1 = inlined_call_operand.hbm [shape: bf16[128,256], index: 1, kind: input, shape index: {}]
  %s2 = inlined_call_operand.vmem [shape: f32[1,256], index: 2, kind: input, shape index: {}]
  %s3 = inlined_call_operand.vmem [shape: bf16[1,256], index: 3, kind: input, shape index: {}]
  %s4 = inlined_call_operand.hbm [shape: f32[1,1,128], index: 4, kind: output, shape index: {}]
  %s5 = sld [smem:[#allocation0]]
  $region34: #{tpu_custom_call.1} parent=0
    _
  %s7 = ssub.s32 1, %s5
  %s8 = scalar_select 0, %s7, %s5
  $region1: #{tpu_custom_call.1} parent=0
    #allocation2 [shape = 'u8[16384]{0}', space=vmem, size = 0x4000, scoped, tag = 'input window, operand 0, single buffered']
    #allocation3 [shape = 's32[1]{0}', space=sflag, size = 0x4, scoped, tag = 'scoped memory for tpu_custom_call.1']
    #allocation4 [shape = 's32[1]{0}', space=sflag, size = 0x4, scoped, tag = 'scoped memory for tpu_custom_call.1']
    #allocation5 [shape = 'u8[65536]{0}', space=vmem, size = 0x10000, scoped, tag = 'input window, operand 1, single buffered']
    #allocation6 [shape = 's32[1]{0}', space=sflag, size = 0x4, scoped, tag = 'scoped memory for tpu_custom_call.1']
    #allocation7 [shape = 'u8[512]{0}', space=vmem, size = 0x400, scoped, tag = 'output window, operand 0, single buffered']
    %9 = vsyncpa [#allocation3], 0
    %10 = vsyncpa [#allocation6], 0
    %11 = vsyncpa [#allocation4], 0
    // Predicated region
    $region2: #{tpu_custom_call.1} parent=1 // pred_check
      _
    $region3: #{tpu_custom_call.1} parent=1 // pred_check_branch
      %13 = sbr.rel (0) target = $region5
    $region4: #{tpu_custom_call.1} parent=1 // pred_region
      %s15 = ssub.s32 512, 512
      %16 = vsyncadd [#allocation3], %s15
      %s17 = sshll.u32 [#allocation2], 4
      %s18 = int_to_ptr.vmem [resolvable:$true] %s17
      %23 = dma.hbm_to_vmem [thread:$0]  %s0, 512, %s18, [#allocation3], 128, 128, 8
    $region5: #{tpu_custom_call.1} parent=1 // pred_fallthru
      _
    // Predicated region
    $region6: #{tpu_custom_call.1} parent=1 // pred_check
      _
    $region7: #{tpu_custom_call.1} parent=1 // pred_check_branch
      %25 = sbr.rel (0) target = $region9
    $region8: #{tpu_custom_call.1} parent=1 // pred_region
      %s27 = ssub.s32 2048, 2048
      %28 = vsyncadd [#allocation6], %s27
      %s29 = sshll.u32 [#allocation5], 4
      %s30 = int_to_ptr.vmem [resolvable:$true] %s29
      %35 = dma.hbm_to_vmem [thread:$0]  %s1, 2048, %s30, [#allocation6], 128, 128, 8
    $region9: #{tpu_custom_call.1} parent=1 // pred_fallthru
      _
    // Predicated region
    $region10: #{tpu_custom_call.1} parent=1 // pred_check
      _
    $region11: #{tpu_custom_call.1} parent=1 // pred_check_branch
      %37 = sbr.rel (0) target = $region13
    $region12: #{tpu_custom_call.1} parent=1 // pred_region
      _
    $region13: #{tpu_custom_call.1} parent=1 // pred_fallthru
      _
    // Predicated region
    $region14: #{tpu_custom_call.1} parent=1 // pred_check
      _
    $region15: #{tpu_custom_call.1} parent=1 // pred_check_branch
      %39 = sbr.rel (0) target = $region17
    $region16: #{tpu_custom_call.1} parent=1 // pred_region
      _
    $region17: #{tpu_custom_call.1} parent=1 // pred_fallthru
      _
    // Predicated region
    $region18: #{tpu_custom_call.1} parent=1 // pred_check
      _
    $region19: #{tpu_custom_call.1} parent=1 // pred_check_branch
      %41 = sbr.rel (0) target = $region21
    $region20: #{tpu_custom_call.1} parent=1 // pred_region
      %42 = dma.done [#allocation3], 512
    $region21: #{tpu_custom_call.1} parent=1 // pred_fallthru
      _
    // Predicated region
    $region22: #{tpu_custom_call.1} parent=1 // pred_check
      _
    $region23: #{tpu_custom_call.1} parent=1 // pred_check_branch
      %44 = sbr.rel (0) target = $region25
    $region24: #{tpu_custom_call.1} parent=1 // pred_region
      %45 = dma.done [#allocation6], 2048
    $region25: #{tpu_custom_call.1} parent=1 // pred_fallthru
      _
    %v47 = vld [vmem:[#allocation2] sm:$0xff]
    %v48 = vld [vmem:[#allocation2 + $0x8] sm:$0xff]
    %v49 = vld [vmem:[#allocation2 + $0x10] sm:$0xff]
    %v50 = vld [vmem:[#allocation2 + $0x18] sm:$0xff]
    %v51 = vunpack.c.l.s8.bf16 %v47
    %v52 = vunpack.c.h.s8.bf16 %v47
    %v53 = vunpack.c.l.s8.bf16 %v48
    %v54 = vunpack.c.h.s8.bf16 %v48
    %v55 = vunpack.c.l.s8.bf16 %v49
    %v56 = vunpack.c.h.s8.bf16 %v49
    %v57 = vunpack.c.l.s8.bf16 %v50
    %v58 = vunpack.c.h.s8.bf16 %v50
    %v59 = vld [vmem:[#allocation5] sm:$0xff]
    %v60 = vld [vmem:[#allocation5 + $0x8] sm:$0xff]
    %v61 = vld [vmem:[#allocation5 + $0x10] sm:$0xff]
    %v62 = vld [vmem:[#allocation5 + $0x18] sm:$0xff]
    %v63 = vld [vmem:[#allocation5 + $0x20] sm:$0xff]
    %v64 = vld [vmem:[#allocation5 + $0x28] sm:$0xff]
    %v65 = vld [vmem:[#allocation5 + $0x30] sm:$0xff]
    %v66 = vld [vmem:[#allocation5 + $0x38] sm:$0xff]
    %v67 = vld [vmem:[#allocation5 + $0x40] sm:$0xff]
    %v68 = vld [vmem:[#allocation5 + $0x48] sm:$0xff]
    %v69 = vld [vmem:[#allocation5 + $0x50] sm:$0xff]
    %v70 = vld [vmem:[#allocation5 + $0x58] sm:$0xff]
    %v71 = vld [vmem:[#allocation5 + $0x60] sm:$0xff]
    %v72 = vld [vmem:[#allocation5 + $0x68] sm:$0xff]
    %v73 = vld [vmem:[#allocation5 + $0x70] sm:$0xff]
    %v74 = vld [vmem:[#allocation5 + $0x78] sm:$0xff]
    %v75 = vld [vmem:[%s2] sm:$0x3]
    %v77 = vlaneseq
    %v78 = vshrl.u32 %v77, 7
    %v79 = vsub.s32 0, %v78
    %v80 = vrot.slane %v75, %v79
    %v81 = vlaneseq
    %v82 = vshrl.u32 %v81, 7
    %v83 = vsub.s32 1, %v82
    %v84 = vrot.slane %v75, %v83
    %v103 = vunpack.c.l.b16 %v59
    %v104 = vunpack.c.h.b16 %v59
    %v105 = vunpack.c.l.b16 %v60
    %v106 = vunpack.c.h.b16 %v60
    %v107 = vunpack.c.l.b16 %v61
    %v108 = vunpack.c.h.b16 %v61
    %v109 = vunpack.c.l.b16 %v62
    %v110 = vunpack.c.h.b16 %v62
    %v111 = vunpack.c.l.b16 %v63
    %v112 = vunpack.c.h.b16 %v63
    %v113 = vunpack.c.l.b16 %v64
    %v114 = vunpack.c.h.b16 %v64
    %v115 = vunpack.c.l.b16 %v65
    %v116 = vunpack.c.h.b16 %v65
    %v117 = vunpack.c.l.b16 %v66
    %v118 = vunpack.c.h.b16 %v66
    %v119 = vunpack.c.l.b16 %v67
    %v120 = vunpack.c.h.b16 %v67
    %v121 = vunpack.c.l.b16 %v68
    %v122 = vunpack.c.h.b16 %v68
    %v123 = vunpack.c.l.b16 %v69
    %v124 = vunpack.c.h.b16 %v69
    %v125 = vunpack.c.l.b16 %v70
    %v126 = vunpack.c.h.b16 %v70
    %v127 = vunpack.c.l.b16 %v71
    %v128 = vunpack.c.h.b16 %v71
    %v129 = vunpack.c.l.b16 %v72
    %v130 = vunpack.c.h.b16 %v72
    %v131 = vunpack.c.l.b16 %v73
    %v132 = vunpack.c.h.b16 %v73
    %v133 = vunpack.c.l.b16 %v74
    %v134 = vunpack.c.h.b16 %v74
    %v135 = vpack.c.b16 %v105, %v103
    %v136 = vpack.c.b16 %v106, %v104
    %v137 = vpack.c.b16 %v109, %v107
    %v138 = vpack.c.b16 %v110, %v108
    %v139 = vpack.c.b16 %v113, %v111
    %v140 = vpack.c.b16 %v114, %v112
    %v141 = vpack.c.b16 %v117, %v115
    %v142 = vpack.c.b16 %v118, %v116
    %v143 = vpack.c.b16 %v121, %v119
    %v144 = vpack.c.b16 %v122, %v120
    %v145 = vpack.c.b16 %v125, %v123
    %v146 = vpack.c.b16 %v126, %v124
    %v147 = vpack.c.b16 %v129, %v127
    %v148 = vpack.c.b16 %v130, %v128
    %v149 = vpack.c.b16 %v133, %v131
    %v150 = vpack.c.b16 %v134, %v132
    %167 = vmatprep.subr.bf16.mxu0 %v150
    %168 = vmatpush1.bf16.msra.mxu0 %v149
    %169 = vmatprep.subr.bf16.mxu0 %v148
    %170 = vmatpush1.bf16.msra.mxu0 %v147
    %171 = vmatprep.subr.bf16.mxu0 %v146
    %172 = vmatpush1.bf16.msra.mxu0 %v145
    %173 = vmatprep.subr.bf16.mxu0 %v144
    %174 = vmatpush1.bf16.msra.mxu0 %v143
    %175 = vmatprep.subr.bf16.mxu0 %v142
    %176 = vmatpush1.bf16.msra.mxu0 %v141
    %177 = vmatprep.subr.bf16.mxu0 %v140
    %178 = vmatpush1.bf16.msra.mxu0 %v139
    %179 = vmatprep.subr.bf16.mxu0 %v138
    %180 = vmatpush1.bf16.msra.mxu0 %v137
    %181 = vmatprep.subr.bf16.mxu0 %v136
    %182 = vmatpush1.bf16.msra.mxu0 %v135
    %183 = vmatprep.subr.bf16.mxu0 0
    %184 = vmatpush2.bf16.msra.mxu0 0
    %185 = vmatprep.subr.bf16.mxu0 0
    %186 = vmatpush2.bf16.msra.mxu0 0
    %187 = vmatprep.subr.bf16.mxu0 0
    %188 = vmatpush2.bf16.msra.mxu0 0
    %189 = vmatprep.subr.bf16.mxu0 0
    %190 = vmatpush2.bf16.msra.mxu0 0
    %191 = vmatprep.subr.bf16.mxu0 0
    %192 = vmatpush2.bf16.msra.mxu0 0
    %193 = vmatprep.subr.bf16.mxu0 0
    %194 = vmatpush2.bf16.msra.mxu0 0
    %195 = vmatprep.subr.bf16.mxu0 0
    %196 = vmatpush2.bf16.msra.mxu0 0
    %197 = vmatprep.subr.bf16.mxu0 0
    %198 = vmatpush2.bf16.msra.mxu0 0
    %199 = vmatprep.mubr.bf16.mxu0 0
    %200 = vmatmul.mubr.bf16.gmra.mxu0 %v51
    %v201 = vpop.f32.mrf.mxu0
    %v202 = vadd.f32 %v80, %v201
    %v203 = vpop.f32.mrf.mxu0
    %v204 = vadd.f32 %v84, %v203
    %v205 = vpop.f32.mrf.mxu0
    %v206 = vadd.f32 %v80, %v205
    %v207 = vpop.f32.mrf.mxu0
    %v208 = vadd.f32 %v84, %v207
    %209 = vmatprep.mubr.bf16.mxu0 0
    %210 = vmatmul.mubr.bf16.gmra.mxu0 %v52
    %v211 = vpop.f32.mrf.mxu0
    %v212 = vadd.f32 %v80, %v211
    %v213 = vpop.f32.mrf.mxu0
    %v214 = vadd.f32 %v84, %v213
    %v215 = vpop.f32.mrf.mxu0
    %v216 = vadd.f32 %v80, %v215
    %v217 = vpop.f32.mrf.mxu0
    %v218 = vadd.f32 %v84, %v217
    %219 = vmatprep.mubr.bf16.mxu0 0
    %220 = vmatmul.mubr.bf16.gmra.mxu0 %v53
    %v221 = vpop.f32.mrf.mxu0
    %v222 = vadd.f32 %v80, %v221
    %v223 = vpop.f32.mrf.mxu0
    %v224 = vadd.f32 %v84, %v223
    %v225 = vpop.f32.mrf.mxu0
    %v226 = vadd.f32 %v80, %v225
    %v227 = vpop.f32.mrf.mxu0
    %v228 = vadd.f32 %v84, %v227
    %229 = vmatprep.mubr.bf16.mxu0 0
    %230 = vmatmul.mubr.bf16.gmra.mxu0 %v54
    %v231 = vpop.f32.mrf.mxu0
    %v232 = vadd.f32 %v80, %v231
    %v233 = vpop.f32.mrf.mxu0
    %v234 = vadd.f32 %v84, %v233
    %v235 = vpop.f32.mrf.mxu0
    %v236 = vadd.f32 %v80, %v235
    %v237 = vpop.f32.mrf.mxu0
    %v238 = vadd.f32 %v84, %v237
    %239 = vmatprep.mubr.bf16.mxu0 0
    %240 = vmatmul.mubr.bf16.gmra.mxu0 %v55
    %v241 = vpop.f32.mrf.mxu0
    %v242 = vadd.f32 %v80, %v241
    %v243 = vpop.f32.mrf.mxu0
    %v244 = vadd.f32 %v84, %v243
    %v245 = vpop.f32.mrf.mxu0
    %v246 = vadd.f32 %v80, %v245
    %v247 = vpop.f32.mrf.mxu0
    %v248 = vadd.f32 %v84, %v247
    %249 = vmatprep.mubr.bf16.mxu0 0
    %250 = vmatmul.mubr.bf16.gmra.mxu0 %v56
    %v251 = vpop.f32.mrf.mxu0
    %v252 = vadd.f32 %v80, %v251
    %v253 = vpop.f32.mrf.mxu0
    %v254 = vadd.f32 %v84, %v253
    %v255 = vpop.f32.mrf.mxu0
    %v256 = vadd.f32 %v80, %v255
    %v257 = vpop.f32.mrf.mxu0
    %v258 = vadd.f32 %v84, %v257
    %259 = vmatprep.mubr.bf16.mxu0 0
    %260 = vmatmul.mubr.bf16.gmra.mxu0 %v57
    %v261 = vpop.f32.mrf.mxu0
    %v262 = vadd.f32 %v80, %v261
    %v263 = vpop.f32.mrf.mxu0
    %v264 = vadd.f32 %v84, %v263
    %v265 = vpop.f32.mrf.mxu0
    %v266 = vadd.f32 %v80, %v265
    %v267 = vpop.f32.mrf.mxu0
    %v268 = vadd.f32 %v84, %v267
    %269 = vmatprep.mubr.bf16.mxu0 0
    %270 = vmatmul.mubr.bf16.gmra.mxu0 %v58
    %v271 = vpop.f32.mrf.mxu0
    %v272 = vadd.f32 %v80, %v271
    %v273 = vpop.f32.mrf.mxu0
    %v274 = vadd.f32 %v84, %v273
    %v275 = vpop.f32.mrf.mxu0
    %v276 = vadd.f32 %v80, %v275
    %v277 = vpop.f32.mrf.mxu0
    %v278 = vadd.f32 %v84, %v277
    %279 = vdwg.mxu0
    %v280 = vmax.f32 %v202, 0.0
    %v281 = vmax.f32 %v204, 0.0
    %v282 = vmax.f32 %v206, 0.0
    %v283 = vmax.f32 %v208, 0.0
    %v284 = vmax.f32 %v212, 0.0
    %v285 = vmax.f32 %v214, 0.0
    %v286 = vmax.f32 %v216, 0.0
    %v287 = vmax.f32 %v218, 0.0
    %v288 = vmax.f32 %v222, 0.0
    %v289 = vmax.f32 %v224, 0.0
    %v290 = vmax.f32 %v226, 0.0
    %v291 = vmax.f32 %v228, 0.0
    %v292 = vmax.f32 %v232, 0.0
    %v293 = vmax.f32 %v234, 0.0
    %v294 = vmax.f32 %v236, 0.0
    %v295 = vmax.f32 %v238, 0.0
    %v296 = vmax.f32 %v242, 0.0
    %v297 = vmax.f32 %v244, 0.0
    %v298 = vmax.f32 %v246, 0.0
    %v299 = vmax.f32 %v248, 0.0
    %v300 = vmax.f32 %v252, 0.0
    %v301 = vmax.f32 %v254, 0.0
    %v302 = vmax.f32 %v256, 0.0
    %v303 = vmax.f32 %v258, 0.0
    %v304 = vmax.f32 %v262, 0.0
    %v305 = vmax.f32 %v264, 0.0
    %v306 = vmax.f32 %v266, 0.0
    %v307 = vmax.f32 %v268, 0.0
    %v308 = vmax.f32 %v272, 0.0
    %v309 = vmax.f32 %v274, 0.0
    %v310 = vmax.f32 %v276, 0.0
    %v311 = vmax.f32 %v278, 0.0
    %v312 = vmin.f32 %v280, 1.0
    %v313 = vmin.f32 %v281, 1.0
    %v314 = vmin.f32 %v282, 1.0
    %v315 = vmin.f32 %v283, 1.0
    %v316 = vmin.f32 %v284, 1.0
    %v317 = vmin.f32 %v285, 1.0
    %v318 = vmin.f32 %v286, 1.0
    %v319 = vmin.f32 %v287, 1.0
    %v320 = vmin.f32 %v288, 1.0
    %v321 = vmin.f32 %v289, 1.0
    %v322 = vmin.f32 %v290, 1.0
    %v323 = vmin.f32 %v291, 1.0
    %v324 = vmin.f32 %v292, 1.0
    %v325 = vmin.f32 %v293, 1.0
    %v326 = vmin.f32 %v294, 1.0
    %v327 = vmin.f32 %v295, 1.0
    %v328 = vmin.f32 %v296, 1.0
    %v329 = vmin.f32 %v297, 1.0
    %v330 = vmin.f32 %v298, 1.0
    %v331 = vmin.f32 %v299, 1.0
    %v332 = vmin.f32 %v300, 1.0
    %v333 = vmin.f32 %v301, 1.0
    %v334 = vmin.f32 %v302, 1.0
    %v335 = vmin.f32 %v303, 1.0
    %v336 = vmin.f32 %v304, 1.0
    %v337 = vmin.f32 %v305, 1.0
    %v338 = vmin.f32 %v306, 1.0
    %v339 = vmin.f32 %v307, 1.0
    %v340 = vmin.f32 %v308, 1.0
    %v341 = vmin.f32 %v309, 1.0
    %v342 = vmin.f32 %v310, 1.0
    %v343 = vmin.f32 %v311, 1.0
    %v344 = vpack.c.bf16 %v314, %v312
    %v345 = vpack.c.bf16 %v315, %v313
    %v346 = vpack.c.bf16 %v318, %v316
    %v347 = vpack.c.bf16 %v319, %v317
    %v348 = vpack.c.bf16 %v322, %v320
    %v349 = vpack.c.bf16 %v323, %v321
    %v350 = vpack.c.bf16 %v326, %v324
    %v351 = vpack.c.bf16 %v327, %v325
    %v352 = vpack.c.bf16 %v330, %v328
    %v353 = vpack.c.bf16 %v331, %v329
    %v354 = vpack.c.bf16 %v334, %v332
    %v355 = vpack.c.bf16 %v335, %v333
    %v356 = vpack.c.bf16 %v338, %v336
    %v357 = vpack.c.bf16 %v339, %v337
    %v358 = vpack.c.bf16 %v342, %v340
    %v359 = vpack.c.bf16 %v343, %v341
    %v360 = vld [vmem:[%s3] sm:$0x3]
    %v363 = vunpack.c.l.s4 1966171168
    %v364 = vunpack.c.0.s8 %v363
    %v365 = vlaneseq
    %v366 = vshrl.u32 %v365, 7
    %v367 = vsub.s32 %v364, %v366
    %v368 = vrot.slane %v360, %v367
    %v369 = vcombine.high %v368, %v368
    %v371 = vunpack.c.l.s4 1966171168
    %v372 = vunpack.c.0.s8 %v371
    %v373 = vlaneseq
    %v374 = vshrl.u32 %v373, 7
    %v375 = vsub.s32 %v372, %v374
    %v376 = vrot.slane %v368, %v375
    %v378 = vunpack.c.l.s4 1966171168
    %v379 = vunpack.c.0.s8 %v378
    %v380 = vlaneseq
    %v381 = vshrl.u32 %v380, 7
    %v382 = vsub.s32 %v379, %v381
    %v383 = vrot.slane %v369, %v382
    %386 = vmatprep.subr.bf16.mxu0 %v359
    %387 = vmatpush1.bf16.xpose.msra.mxu0 %v358
    %388 = vmatprep.subr.bf16.mxu0 %v357
    %389 = vmatpush1.bf16.xpose.msra.mxu0 %v356
    %390 = vmatprep.subr.bf16.mxu0 %v355
    %391 = vmatpush1.bf16.xpose.msra.mxu0 %v354
    %392 = vmatprep.subr.bf16.mxu0 %v353
    %393 = vmatpush1.bf16.xpose.msra.mxu0 %v352
    %394 = vmatprep.subr.bf16.mxu0 %v351
    %395 = vmatpush1.bf16.xpose.msra.mxu0 %v350
    %396 = vmatprep.subr.bf16.mxu0 %v349
    %397 = vmatpush1.bf16.xpose.msra.mxu0 %v348
    %398 = vmatprep.subr.bf16.mxu0 %v347
    %399 = vmatpush1.bf16.xpose.msra.mxu0 %v346
    %400 = vmatprep.subr.bf16.mxu0 %v345
    %401 = vmatpush1.bf16.xpose.msra.mxu0 %v344
    %402 = vmatprep.subr.bf16.mxu0 0
    %403 = vmatpush2.bf16.xpose.msra.mxu0 0
    %404 = vmatprep.subr.bf16.mxu0 0
    %405 = vmatpush2.bf16.xpose.msra.mxu0 0
    %406 = vmatprep.subr.bf16.mxu0 0
    %407 = vmatpush2.bf16.xpose.msra.mxu0 0
    %408 = vmatprep.subr.bf16.mxu0 0
    %409 = vmatpush2.bf16.xpose.msra.mxu0 0
    %410 = vmatprep.subr.bf16.mxu0 0
    %411 = vmatpush2.bf16.xpose.msra.mxu0 0
    %412 = vmatprep.subr.bf16.mxu0 0
    %413 = vmatpush2.bf16.xpose.msra.mxu0 0
    %414 = vmatprep.subr.bf16.mxu0 0
    %415 = vmatpush2.bf16.xpose.msra.mxu0 0
    %416 = vmatprep.subr.bf16.mxu0 0
    %417 = vmatpush2.bf16.xpose.msra.mxu0 0
    %418 = vmatprep.mubr.bf16.mxu0 %v383
    %419 = vmatmul.mubr.bf16.gmra.mxu0 %v376
    %v420 = vpop.f32.mrf.mxu0
    %v421 = vadd.f32 -0.03109718, %v420
    %v422 = vpop.f32.mrf.mxu0
    %v423 = vpop.f32.mrf.mxu0
    %v424 = vpop.f32.mrf.mxu0
    %425 = vdwg.mxu0
    %426 = vst [vmem:[#allocation7] sm:$0x1] %v421
    // Predicated region
    $region26: #{tpu_custom_call.1} parent=1 // pred_check
      _
    $region27: #{tpu_custom_call.1} parent=1 // pred_check_branch
      %428 = sbr.rel (0) target = $region29
    $region28: #{tpu_custom_call.1} parent=1 // pred_region
      %s430 = ssub.s32 16, 16
      %431 = vsyncadd [#allocation4], %s430
      %s433 = sshll.u32 [#allocation7], 4
      %s434 = int_to_ptr.vmem [resolvable:$true] %s433
      %436 = dma.vmem_to_hbm [thread:$0]  %s434, 16, %s4, [#allocation4]
    $region29: #{tpu_custom_call.1} parent=1 // pred_fallthru
      _
    // Predicated region
    $region30: #{tpu_custom_call.1} parent=1 // pred_check
      _
    $region31: #{tpu_custom_call.1} parent=1 // pred_check_branch
      %438 = sbr.rel (0) target = $region33
    $region32: #{tpu_custom_call.1} parent=1 // pred_region
      %439 = dma.done [#allocation4], 16
    $region33: #{tpu_custom_call.1} parent=1 // pred_fallthru
      _
    %440 = vsyncpa [#allocation3], 1
    %441 = vsyncpa [#allocation6], 1
    %442 = vsyncpa [#allocation4], 1

</llo_original>
